<compile_context>
chip_gen: v6e
topology: v6e:2x2x1
jax: 0.10.0
libtpu: 0.0.40
codegen_flags: <defaults>
</compile_context>

<pallas_src>
import jax
import jax.numpy as jnp
from jax import lax
from jax.experimental import pallas as pl
from jax.experimental.pallas import tpu as pltpu

EPS = 1e-6


def _rollout_kernel(x_ref, sp_ref, w_ref, b_ref, o_ref, cur_ref):
    """One rollout step for the whole (small) batch; prediction carried in VMEM.

    x_ref:   (B, C, HW) f32   initial un-normalized input (only read at step 0)
    sp_ref:  (C, HW)    f32   hoisted static projection  Ws @ static (step invariant)
    w_ref:   (C, C)     bf16  model weight acting on the dynamic channels
    b_ref:   (C, 1)     f32   model bias
    o_ref:   (B, C, HW) f32   output slice for rollout step s (step axis squeezed)
    cur_ref: (B, C, HW) f32   VMEM scratch: rollout input carried across steps
    """
    step = pl.program_id(0)
    nb = x_ref.shape[0]

    # append_history carry: step 0 starts from the real input.
    @pl.when(step == 0)
    def _():
        cur_ref[...] = x_ref[...]

    x = cur_ref[...]                                      # (B, C, HW) f32
    inv_hw = 1.0 / float(x.shape[-1])

    # --- history_compute_stats: per-(batch, channel) stats over space -------
    # Two-pass form: mean first, then sum((x - mean)^2).  The single-pass
    # E[x^2]-E[x]^2 form is cancellation-prone for un-normalized physical
    # fields; the centered values are reused for the normalization below, so
    # this costs no extra traversal of x.
    mean = jnp.sum(x, axis=-1, keepdims=True) * inv_hw    # (B, C, 1)
    xc = x - mean
    var = jnp.sum(xc * xc, axis=-1, keepdims=True) * inv_hw
    var_eps = var + EPS
    inv_std = lax.rsqrt(var_eps)                          # EUP, no divide
    std = var_eps * inv_std                               # sqrt(var+eps) w/o vsqrt

    # --- history_normalize -> model (1x1 conv) -> denormalize -> residual ---
    #   pred = std * (Wd @ xn + Ws@static + b) + mean + x
    # MXU path in bf16 (xn is z-scored -> bf16-safe), f32 accumulation.
    xn16 = (xc * inv_std).astype(jnp.bfloat16)            # (B, C, HW) bf16
    w16 = w_ref[...]                                      # (C, C) bf16
    predn = jnp.stack(
        [jnp.dot(w16, xn16[b], preferred_element_type=jnp.float32)
         for b in range(nb)],
        axis=0)                                           # (B, C, HW) f32
    pred = std * (predn + sp_ref[...][None] + b_ref[...][None]) + mean + x

    # Write this step's prediction straight into its (b, step) output slice.
    o_ref[...] = pred

    # append_history (n_history=0): carry the prediction as the next input.
    # The final step's carry store is dead -> skip it (saves one vst pass).
    @pl.when(step != pl.num_programs(0) - 1)
    def _():
        cur_ref[...] = pred


def multi_step_forward(x, static_feats, w_dyn, w_static, bias, n_future):
    """MultiStepWrapper._forward_train.  x: NCHW (B,C,H,W) -> (B,(n_future+1)*C,H,W)."""
    B, C, H, W = x.shape
    HW = H * W
    n_steps = n_future + 1

    x_flat = x.reshape(B, C, HW).astype(jnp.float32)
    static_flat = static_feats.reshape(static_feats.shape[0], HW).astype(jnp.float32)

    # Hoist the batch/step-invariant static-feature matmul out of the rollout.
    static_proj = jnp.dot(w_static, static_flat,
                          preferred_element_type=jnp.float32)        # (C, HW)

    # bf16 weights for the MXU path; everything else stays f32.
    w16 = w_dyn.astype(jnp.bfloat16)
    bias = bias.astype(jnp.float32)

    # VMEM working set: x (1 buf, single-buffered) + static_proj (1) +
    # out (2, double-buffered) + carry scratch (1) + small params.
    block_bytes = B * C * HW * 4
    working_set = 5 * block_bytes + C * HW * 4 + C * C * 2 + C * 4
    if working_set > (40 << 20) or HW % 128 != 0:
        # TODO(synk): spatially-tiled / HBM-carried rollout for production
        # resolution (see module docstring) is not implemented here.
        raise NotImplementedError(
            "working set exceeds the VMEM-resident rollout path")
    vmem_bytes = int(min(max(2 * working_set + (4 << 20), 16 << 20), 48 << 20))

    out = pl.pallas_call(
        _rollout_kernel,
        out_shape=jax.ShapeDtypeStruct((B, n_steps, C, HW), jnp.float32),
        grid_spec=pltpu.PrefetchScalarGridSpec(
            num_scalar_prefetch=0,
            grid=(n_steps,),
            in_specs=[
                # Grid-invariant operands: constant block index -> no re-DMA;
                # single-buffered so no dead second copy eats VMEM budget.
                pl.BlockSpec((B, C, HW), lambda s: (0, 0, 0),
                             pipeline_mode=pl.Buffered(1)),
                pl.BlockSpec((C, HW), lambda s: (0, 0),
                             pipeline_mode=pl.Buffered(1)),
                pl.BlockSpec((C, C), lambda s: (0, 0),
                             pipeline_mode=pl.Buffered(1)),
                pl.BlockSpec((C, 1), lambda s: (0, 0),
                             pipeline_mode=pl.Buffered(1)),
            ],
            # Each step's prediction lands directly in its output slice
            # (lane-dense: HW is a multiple of 128), default double buffering
            # so writeback of step s-1 overlaps compute of step s.
            out_specs=pl.BlockSpec((B, None, C, HW), lambda s: (0, s, 0, 0)),
            scratch_shapes=[pltpu.VMEM((B, C, HW), jnp.float32)],
        ),
        compiler_params=pltpu.CompilerParams(
            dimension_semantics=("arbitrary",),
            vmem_limit_bytes=vmem_bytes),
    )(x_flat, static_proj, w16, bias)

    # (B, n_steps, C, HW) -> (B, n_steps*C, H, W): contiguous metadata reshape.
    return out.reshape(B, n_steps * C, H, W)


# ---------------- pure-JAX f32 reference for validation ----------------
def _ref_step(x_flat, static_flat, w_dyn, w_static, bias):
    mean = jnp.mean(x_flat, axis=-1, keepdims=True)
    var = jnp.mean((x_flat - mean) ** 2, axis=-1, keepdims=True)
    std = jnp.sqrt(var + EPS)
    xn = (x_flat - mean) / std
    predn = (jnp.einsum("oc,bcs->bos", w_dyn, xn)
             + jnp.einsum("oc,cs->os", w_static, static_flat)[None]
             + bias[None])
    return predn * std + mean + x_flat


def reference_forward(x, static_feats, w_dyn, w_static, bias, n_future):
    B, C, H, W = x.shape
    x_flat = x.reshape(B, C, H * W)
    static_flat = static_feats.reshape(static_feats.shape[0], H * W)
    results = []
    inpt = x_flat
    for step in range(n_future + 1):
        pred = _ref_step(inpt, static_flat, w_dyn, w_static, bias)
        results.append(pred)
        if step == n_future:
            break
        inpt = pred
    out = jnp.concatenate(results, axis=1)
    return out.reshape(B, (n_future + 1) * C, H, W)


if __name__ == "__main__":
    B, C, H, W = 2, 4, 16, 16      # NCHW, like the PyTorch module
    Cs = 2                         # static-feature channels
    n_future = 2                   # params.n_future -> 3 rollout steps

    key = jax.random.PRNGKey(0)
    k1, k2, k3 = jax.random.split(key, 3)
    x = jax.random.normal(k1, (B, C, H, W), jnp.float32)

    # deterministic static features (lat/lon-style grids)
    yy = jnp.linspace(-1.0, 1.0, H)[:, None] * jnp.ones((1, W))
    xx = jnp.ones((H, 1)) * jnp.linspace(-1.0, 1.0, W)[None, :]
    static_feats = jnp.stack(
        [jnp.sin(jnp.pi * yy), jnp.cos(jnp.pi * xx)], axis=0).astype(jnp.float32)

    # deterministic model parameters (1x1 conv: (C + Cs) -> C)
    w_full = 0.1 * jax.random.normal(k2, (C, C + Cs), jnp.float32)
    w_dyn, w_static = w_full[:, :C], w_full[:, C:]
    bias = 0.01 * jax.random.normal(k3, (C, 1), jnp.float32)

    out = multi_step_forward(x, static_feats, w_dyn, w_static, bias, n_future)
    out = jax.block_until_ready(out)

    ref = reference_forward(x, static_feats, w_dyn, w_static, bias, n_future)
    assert out.shape == (B, (n_future + 1) * C, H, W)
    # Kernel runs the channel-mixing matmul with bf16 operands (f32 accumulate);
    # vs. the pure-f32 reference this contributes ~1e-3 abs error over 3 rollout
    # steps, so the comparison tolerance is 2e-2.
    assert jnp.allclose(out, ref, atol=2e-2, rtol=2e-2), "mismatch vs reference"

    print("KERNEL_OK")
</pallas_src>

<mosaic_0001>
module attributes {stable_mosaic.version = 11 : i64} {
  func.func @_rollout_kernel(%arg0: i32, %arg1: memref<2x4x256xf32, #tpu.memory_space<vmem>>, %arg2: memref<4x256xf32, #tpu.memory_space<vmem>>, %arg3: memref<4x4xbf16, #tpu.memory_space<vmem>>, %arg4: memref<4x1xf32, #tpu.memory_space<vmem>>, %arg5: memref<2x1x4x256xf32, #tpu.memory_space<vmem>>, %arg6: memref<2x4x256xf32, #tpu.memory_space<vmem>>) attributes {dimension_semantics = [#tpu.dimension_semantics<arbitrary>], iteration_bounds = array<i64: 3>, scalar_prefetch = 0 : i64, scratch_operands = 1 : i64, tpu.core_type = #tpu.core_type<tc>, window_params = [{pipeline_mode = #tpu.pipeline_mode<synchronous>, transform_indices = @transform_0, window_bounds = array<i64: 2, 4, 256>}, {pipeline_mode = #tpu.pipeline_mode<synchronous>, transform_indices = @transform_1, window_bounds = array<i64: 4, 256>}, {pipeline_mode = #tpu.pipeline_mode<synchronous>, transform_indices = @transform_2, window_bounds = array<i64: 4, 4>}, {pipeline_mode = #tpu.pipeline_mode<synchronous>, transform_indices = @transform_3, window_bounds = array<i64: 4, 1>}, {transform_indices = @transform_4, window_bounds = array<i64: 2, 1, 4, 256>}]} {
    %c0_i32 = arith.constant 0 : i32
    %0 = arith.cmpi eq, %arg0, %c0_i32 : i32
    %1 = arith.extui %0 : i1 to i32
    %c0_i32_0 = arith.constant 0 : i32
    %2 = arith.cmpi ne, %1, %c0_i32_0 : i32
    scf.if %2 {
      %c0_20 = arith.constant 0 : index
      %c0_21 = arith.constant 0 : index
      %c0_22 = arith.constant 0 : index
      %51 = vector.load %arg1[%c0_20, %c0_21, %c0_22] : memref<2x4x256xf32, #tpu.memory_space<vmem>>, vector<2x4x256xf32>
      %c0_23 = arith.constant 0 : index
      %c0_24 = arith.constant 0 : index
      %c0_25 = arith.constant 0 : index
      %52 = vector.load %arg6[%c0_23, %c0_24, %c0_25] : memref<2x4x256xf32, #tpu.memory_space<vmem>>, vector<2x4x256xf32>
      tpu.vector_store %arg6[%c0_23, %c0_24, %c0_25], %51 {strides = array<i32>} : memref<2x4x256xf32, #tpu.memory_space<vmem>>, vector<2x4x256xf32>,
    } else {
    }
    %c0 = arith.constant 0 : index
    %c0_1 = arith.constant 0 : index
    %c0_2 = arith.constant 0 : index
    %3 = vector.load %arg6[%c0, %c0_1, %c0_2] : memref<2x4x256xf32, #tpu.memory_space<vmem>>, vector<2x4x256xf32>
    %cst = arith.constant dense<0.000000e+00> : vector<2x4xf32>
    %4 = vector.multi_reduction <add>, %3, %cst [2] : vector<2x4x256xf32> to vector<2x4xf32>
    %5 = vector.shape_cast %4 : vector<2x4xf32> to vector<2x4x1xf32>
    %cst_3 = arith.constant 3.906250e-03 : f32
    %6 = vector.broadcast %cst_3 : f32 to vector<2x4x1xf32>
    %7 = arith.mulf %5, %6 : vector<2x4x1xf32>
    %8 = vector.broadcast %7 : vector<2x4x1xf32> to vector<2x4x256xf32>
    %9 = arith.subf %3, %8 : vector<2x4x256xf32>
    %10 = arith.mulf %9, %9 : vector<2x4x256xf32>
    %cst_4 = arith.constant dense<0.000000e+00> : vector<2x4xf32>
    %11 = vector.multi_reduction <add>, %10, %cst_4 [2] : vector<2x4x256xf32> to vector<2x4xf32>
    %12 = vector.shape_cast %11 : vector<2x4xf32> to vector<2x4x1xf32>
    %cst_5 = arith.constant 3.906250e-03 : f32
    %13 = vector.broadcast %cst_5 : f32 to vector<2x4x1xf32>
    %14 = arith.mulf %12, %13 : vector<2x4x1xf32>
    %cst_6 = arith.constant 9.99999997E-7 : f32
    %15 = vector.broadcast %cst_6 : f32 to vector<2x4x1xf32>
    %16 = arith.addf %14, %15 : vector<2x4x1xf32>
    %17 = math.rsqrt %16 : vector<2x4x1xf32>
    %18 = arith.mulf %16, %17 : vector<2x4x1xf32>
    %19 = vector.broadcast %17 : vector<2x4x1xf32> to vector<2x4x256xf32>
    %20 = arith.mulf %9, %19 : vector<2x4x256xf32>
    %21 = arith.truncf %20 : vector<2x4x256xf32> to vector<2x4x256xbf16>
    %c0_7 = arith.constant 0 : index
    %c0_8 = arith.constant 0 : index
    %22 = vector.load %arg3[%c0_7, %c0_8] : memref<4x4xbf16, #tpu.memory_space<vmem>>, vector<4x4xbf16>
    %23 = vector.extract_strided_slice %21 {offsets = [0, 0, 0], sizes = [1, 4, 256], strides = [1, 1, 1]} : vector<2x4x256xbf16> to vector<1x4x256xbf16>
    %24 = vector.shape_cast %23 : vector<1x4x256xbf16> to vector<4x256xbf16>
    %cst_9 = arith.constant dense<0.000000e+00> : vector<4x256xf32>
    %25 = tpu.matmul %22, %24, %cst_9 {dimension_numbers = #tpu.dot_dimension_numbers<[1], [0], [0], [1], [0, 0, 1, 1], [], []>} : vector<4x4xbf16>, vector<4x256xbf16>, vector<4x256xf32> -> vector<4x256xf32>
    %26 = vector.extract_strided_slice %21 {offsets = [1, 0, 0], sizes = [1, 4, 256], strides = [1, 1, 1]} : vector<2x4x256xbf16> to vector<1x4x256xbf16>
    %27 = vector.shape_cast %26 : vector<1x4x256xbf16> to vector<4x256xbf16>
    %cst_10 = arith.constant dense<0.000000e+00> : vector<4x256xf32>
    %28 = tpu.matmul %22, %27, %cst_10 {dimension_numbers = #tpu.dot_dimension_numbers<[1], [0], [0], [1], [0, 0, 1, 1], [], []>} : vector<4x4xbf16>, vector<4x256xbf16>, vector<4x256xf32> -> vector<4x256xf32>
    %29 = vector.shape_cast %25 : vector<4x256xf32> to vector<1x4x256xf32>
    %30 = vector.shape_cast %28 : vector<4x256xf32> to vector<1x4x256xf32>
    %31 = tpu.concatenate %29, %30 in 0 : vector<1x4x256xf32>, vector<1x4x256xf32> -> vector<2x4x256xf32>
    %c0_11 = arith.constant 0 : index
    %c0_12 = arith.constant 0 : index
    %32 = vector.load %arg2[%c0_11, %c0_12] : memref<4x256xf32, #tpu.memory_space<vmem>>, vector<4x256xf32>
    %33 = vector.shape_cast %32 : vector<4x256xf32> to vector<1x4x256xf32>
    %34 = vector.broadcast %33 : vector<1x4x256xf32> to vector<2x4x256xf32>
    %35 = arith.addf %31, %34 : vector<2x4x256xf32>
    %c0_13 = arith.constant 0 : index
    %c0_14 = arith.constant 0 : index
    %36 = vector.load %arg4[%c0_13, %c0_14] : memref<4x1xf32, #tpu.memory_space<vmem>>, vector<4x1xf32>
    %37 = vector.shape_cast %36 : vector<4x1xf32> to vector<1x4x1xf32>
    %38 = vector.broadcast %37 : vector<1x4x1xf32> to vector<2x4x256xf32>
    %39 = arith.addf %35, %38 : vector<2x4x256xf32>
    %40 = vector.broadcast %18 : vector<2x4x1xf32> to vector<2x4x256xf32>
    %41 = arith.mulf %40, %39 : vector<2x4x256xf32>
    %42 = vector.broadcast %7 : vector<2x4x1xf32> to vector<2x4x256xf32>
    %43 = arith.addf %41, %42 : vector<2x4x256xf32>
    %44 = arith.addf %43, %3 : vector<2x4x256xf32>
    %c0_15 = arith.constant 0 : index
    %c0_16 = arith.constant 0 : index
    %c0_17 = arith.constant 0 : index
    %c0_18 = arith.constant 0 : index
    %45 = vector.load %arg5[%c0_15, %c0_16, %c0_17, %c0_18] : memref<2x1x4x256xf32, #tpu.memory_space<vmem>>, vector<2x1x4x256xf32>
    %46 = vector.shape_cast %45 : vector<2x1x4x256xf32> to vector<2x4x256xf32>
    %47 = vector.shape_cast %44 : vector<2x4x256xf32> to vector<2x1x4x256xf32>
    tpu.vector_store %arg5[%c0_15, %c0_16, %c0_17, %c0_18], %47 {strides = array<i32>} : memref<2x1x4x256xf32, #tpu.memory_space<vmem>>, vector<2x1x4x256xf32>,
    %c2_i32 = arith.constant 2 : i32
    %48 = arith.cmpi ne, %arg0, %c2_i32 : i32
    %49 = arith.extui %48 : i1 to i32
    %c0_i32_19 = arith.constant 0 : i32
    %50 = arith.cmpi ne, %49, %c0_i32_19 : i32
    scf.if %50 {
      %c0_20 = arith.constant 0 : index
      %c0_21 = arith.constant 0 : index
      %c0_22 = arith.constant 0 : index
      %51 = vector.load %arg6[%c0_20, %c0_21, %c0_22] : memref<2x4x256xf32, #tpu.memory_space<vmem>>, vector<2x4x256xf32>
      tpu.vector_store %arg6[%c0_20, %c0_21, %c0_22], %44 {strides = array<i32>} : memref<2x4x256xf32, #tpu.memory_space<vmem>>, vector<2x4x256xf32>,
    } else {
    }
    return
  }
  func.func @transform_0(%arg0: i32) -> (i32, i32, i32) {
    %c0_i32 = arith.constant 0 : i32
    %c0_i32_0 = arith.constant 0 : i32
    %c0_i32_1 = arith.constant 0 : i32
    %c0_i32_2 = arith.constant 0 : i32
    return %c0_i32, %c0_i32_0, %c0_i32_1 : i32, i32, i32
  }
  func.func @transform_1(%arg0: i32) -> (i32, i32) {
    %c0_i32 = arith.constant 0 : i32
    %c0_i32_0 = arith.constant 0 : i32
    %c0_i32_1 = arith.constant 0 : i32
    return %c0_i32, %c0_i32_0 : i32, i32
  }
  func.func @transform_2(%arg0: i32) -> (i32, i32) {
    %c0_i32 = arith.constant 0 : i32
    %c0_i32_0 = arith.constant 0 : i32
    %c0_i32_1 = arith.constant 0 : i32
    return %c0_i32, %c0_i32_0 : i32, i32
  }
  func.func @transform_3(%arg0: i32) -> (i32, i32) {
    %c0_i32 = arith.constant 0 : i32
    %c0_i32_0 = arith.constant 0 : i32
    %c0_i32_1 = arith.constant 0 : i32
    return %c0_i32, %c0_i32_0 : i32, i32
  }
  func.func @transform_4(%arg0: i32) -> (i32, i32, i32, i32) {
    %c0_i32 = arith.constant 0 : i32
    %c0_i32_0 = arith.constant 0 : i32
    %c0_i32_1 = arith.constant 0 : i32
    %c0_i32_2 = arith.constant 0 : i32
    return %c0_i32, %arg0, %c0_i32_0, %c0_i32_1 : i32, i32, i32, i32
  }
}

</mosaic_0001>

<llo_original>
// kernel: tpu_custom_call.1
$region0: #{tpu_custom_call.1}
  #allocation0 [shape = 'u32[]', space=smem, size = 0x4, offset = 0x4, fixed_abs, tag = 'smem constant byte address 0x4 - core index']
  #allocation1 [shape = 'u32[144,128]{1,0:T(1,128)}', space=vmem, size = 0x12000, scoped, tag = 'internal scratch']
  #allocation2 [shape = 'f32[2,4,256]{2,1,0:T(4,128)}', space=vmem, size = 0x2000, scoped, tag = 'scratch operand']
  %s0 = inlined_call_operand.hbm [shape: f32[2,4,256], index: 0, kind: input, shape index: {}]
  %s1 = inlined_call_operand.hbm [shape: f32[4,256], index: 1, kind: input, shape index: {}]
  %s2 = inlined_call_operand.vmem [shape: bf16[4,4], index: 2, kind: input, shape index: {}]
  %s3 = inlined_call_operand.vmem [shape: f32[4,1], index: 3, kind: input, shape index: {}]
  %s4 = inlined_call_operand.hbm [shape: f32[2,3,4,256], index: 4, kind: output, shape index: {}]
  %s5 = sld [smem:[#allocation0]]
  $region65: #{tpu_custom_call.1} parent=0
    _
  %s7 = ssub.s32 1, %s5
  %s8 = scalar_select 0, %s7, %s5
  $region1: #{tpu_custom_call.1} parent=0
    #allocation3 [shape = 'u8[8192]{0}', space=vmem, size = 0x2000, scoped, tag = 'input window, operand 0, single buffered']
    #allocation4 [shape = 's32[2]{0}', space=sflag, size = 0x8, scoped, tag = 'scoped memory for tpu_custom_call.1']
    #allocation5 [shape = 's32[2]{0}', space=sflag, size = 0x8, scoped, tag = 'scoped memory for tpu_custom_call.1']
    #allocation6 [shape = 'u8[4096]{0}', space=vmem, size = 0x1000, scoped, tag = 'input window, operand 1, single buffered']
    #allocation7 [shape = 's32[1]{0}', space=sflag, size = 0x4, scoped, tag = 'scoped memory for tpu_custom_call.1']
    #allocation8 [shape = 'u8[16384]{0}', space=vmem, size = 0x4000, scoped, tag = 'output window, operand 0']
    %9 = vsyncpa [#allocation4], 0
    %10 = vsyncpa [#allocation7], 0
    %11 = vsyncpa [#allocation5], 0
    %s12 = scalar_lea.sflag [#allocation5], 1
    %13 = vsyncpa %s12, 0
    loop: start=0, step=1, limit=5
    $region2: #{tpu_custom_call.1} parent=1 // loop_pre_header
      _
    $region3: #{tpu_custom_call.1} parent=1 // loop_header
      %s15 = sphi 0, %s19
      %p16 = scmp.ge.s32.totalorder %s15, 5
      %s23 = sphi 0, %s23
      %s25 = sphi 0, %s23
      %s26 = sphi 0, %s25
      %s40 = sphi 0, %s26
      %s44 = sphi 0, %s44
      %s46 = sphi 0, %s44
      %s47 = sphi 0, %s46
      %s61 = sphi 0, %s47
      %s65 = sphi 0, %s65
      %s67 = sphi 0, %s65
      %s68 = sphi 0, %s67
      %s82 = sphi 0, %s68
      %s86 = sphi 0, %s86
      %s88 = sphi 0, %s86
      %s89 = sphi 0, %s88
      %s103 = sphi 0, %s89
      %s109 = sphi 0, %s111
      %s112 = sphi 0, %s109
      %s113 = sphi 0, %s112
      %s129 = sphi 0, %s113
    $region4: #{tpu_custom_call.1} parent=1 // loop_header_branch
      %18 = sbr.rel (%p16) target = $region8
    $region5: #{tpu_custom_call.1} parent=1 // loop_body
      %s20 = ssub.s32 %s15, 1
      %s21 = ssub.s32 %s15, 2
      %s22 = sadd.s32 %s15, 1
      %s24 = sadd.s32 %s23, 1
      %p27 = scmp.eq.s32.totalorder %s15, 2
      %p28 = scmp.ne.s32.totalorder %s23, %s25
      %p29 = scmp.eq.s32.totalorder %s15, 0
      %p30 = por %p28, %p29
      %p31 = scmp.ne.s32.totalorder %s23, %s25
      %p32 = scmp.eq.s32.totalorder %s20, 2
      %p33 = por %p31, %p32
      %p34 = scmp.ne.s32.totalorder %s25, %s26
      %p35 = scmp.eq.s32.totalorder %s20, 0
      %p36 = por %p34, %p35
      %p37 = scmp.ne.s32.totalorder %s25, %s26
      %p38 = scmp.eq.s32.totalorder %s21, 2
      %p39 = por %p37, %p38
      %p41 = scmp.ne.s32.totalorder %s26, %s40
      %p42 = scmp.eq.s32.totalorder %s21, 0
      %p43 = por %p41, %p42
      %s45 = sadd.s32 %s44, 1
      %p48 = scmp.eq.s32.totalorder %s15, 2
      %p49 = scmp.ne.s32.totalorder %s44, %s46
      %p50 = scmp.eq.s32.totalorder %s15, 0
      %p51 = por %p49, %p50
      %p52 = scmp.ne.s32.totalorder %s44, %s46
      %p53 = scmp.eq.s32.totalorder %s20, 2
      %p54 = por %p52, %p53
      %p55 = scmp.ne.s32.totalorder %s46, %s47
      %p56 = scmp.eq.s32.totalorder %s20, 0
      %p57 = por %p55, %p56
      %p58 = scmp.ne.s32.totalorder %s46, %s47
      %p59 = scmp.eq.s32.totalorder %s21, 2
      %p60 = por %p58, %p59
      %p62 = scmp.ne.s32.totalorder %s47, %s61
      %p63 = scmp.eq.s32.totalorder %s21, 0
      %p64 = por %p62, %p63
      %s66 = sadd.s32 %s65, 1
      %p69 = scmp.eq.s32.totalorder %s15, 2
      %p70 = scmp.ne.s32.totalorder %s65, %s67
      %p71 = scmp.eq.s32.totalorder %s15, 0
      %p72 = por %p70, %p71
      %p73 = scmp.ne.s32.totalorder %s65, %s67
      %p74 = scmp.eq.s32.totalorder %s20, 2
      %p75 = por %p73, %p74
      %p76 = scmp.ne.s32.totalorder %s67, %s68
      %p77 = scmp.eq.s32.totalorder %s20, 0
      %p78 = por %p76, %p77
      %p79 = scmp.ne.s32.totalorder %s67, %s68
      %p80 = scmp.eq.s32.totalorder %s21, 2
      %p81 = por %p79, %p80
      %p83 = scmp.ne.s32.totalorder %s68, %s82
      %p84 = scmp.eq.s32.totalorder %s21, 0
      %p85 = por %p83, %p84
      %s87 = sadd.s32 %s86, 1
      %p90 = scmp.eq.s32.totalorder %s15, 2
      %p91 = scmp.ne.s32.totalorder %s86, %s88
      %p92 = scmp.eq.s32.totalorder %s15, 0
      %p93 = por %p91, %p92
      %p94 = scmp.ne.s32.totalorder %s86, %s88
      %p95 = scmp.eq.s32.totalorder %s20, 2
      %p96 = por %p94, %p95
      %p97 = scmp.ne.s32.totalorder %s88, %s89
      %p98 = scmp.eq.s32.totalorder %s20, 0
      %p99 = por %p97, %p98
      %p100 = scmp.ne.s32.totalorder %s88, %s89
      %p101 = scmp.eq.s32.totalorder %s21, 2
      %p102 = por %p100, %p101
      %p104 = scmp.ne.s32.totalorder %s89, %s103
      %p105 = scmp.eq.s32.totalorder %s21, 0
      %p106 = por %p104, %p105
      %s107 = ssub.s32 %s15, %s22
      %p108 = scmp.eq.s32.totalorder %s107, 0
      %s110 = sadd.s32 %s109, 1
      %s111 = scalar_select %p108, %s109, %s110
      %p114 = pneg %p108
      %p115 = scmp.eq.s32.totalorder %s15, 2
      %p116 = por %p114, %p115
      %p117 = scmp.ne.s32.totalorder %s109, %s112
      %p118 = scmp.eq.s32.totalorder %s15, 0
      %p119 = por %p117, %p118
      %p120 = scmp.ne.s32.totalorder %s109, %s112
      %p121 = scmp.eq.s32.totalorder %s20, 2
      %p122 = por %p120, %p121
      %p123 = scmp.ne.s32.totalorder %s112, %s113
      %p124 = scmp.eq.s32.totalorder %s20, 0
      %p125 = por %p123, %p124
      %p126 = scmp.ne.s32.totalorder %s112, %s113
      %p127 = scmp.eq.s32.totalorder %s21, 2
      %p128 = por %p126, %p127
      %p130 = scmp.ne.s32.totalorder %s113, %s129
      %p131 = scmp.eq.s32.totalorder %s21, 0
      %p132 = por %p130, %p131
      %p133 = scmp.le.s32.totalorder 1, %s15
      %p134 = scmp.lt.s32.totalorder %s15, 4
      %p135 = pnand %p133, %p134
      %p136 = pneg %p135
      // Predicated region
      $region9: #{tpu_custom_call.1} parent=5 // pred_check
        _
      $region10: #{tpu_custom_call.1} parent=5 // pred_check_branch
        %138 = sbr.rel (%p135) target = $region12
      $region11: #{tpu_custom_call.1} parent=5 // pred_region
        %s139 = ssub.s32 %s15, 1
        // Predicated region
        $region13: #{tpu_custom_call.1} parent=11 // pred_check
          %p140 = pneg %p36
        $region14: #{tpu_custom_call.1} parent=11 // pred_check_branch
          %142 = sbr.rel (%p140) target = $region16
        $region15: #{tpu_custom_call.1} parent=11 // pred_region
          %s144 = ssub.s32 256, 256
          %145 = vsyncadd [#allocation4], %s144
          %s146 = sshll.u32 [#allocation3], 4
          %s147 = int_to_ptr.vmem [resolvable:$true] %s146
          %152 = dma.hbm_to_vmem [thread:$0]  %s0, 256, %s147, [#allocation4], 128, 128, 8
        $region16: #{tpu_custom_call.1} parent=11 // pred_fallthru
          _
        // Predicated region
        $region17: #{tpu_custom_call.1} parent=11 // pred_check
          %p153 = pneg %p57
        $region18: #{tpu_custom_call.1} parent=11 // pred_check_branch
          %155 = sbr.rel (%p153) target = $region20
        $region19: #{tpu_custom_call.1} parent=11 // pred_region
          %s157 = ssub.s32 128, 128
          %158 = vsyncadd [#allocation7], %s157
          %s160 = sshll.u32 [#allocation6], 4
          %s161 = int_to_ptr.vmem [resolvable:$true] %s160
          %163 = dma.hbm_to_vmem [thread:$0]  %s1, 128, %s161, [#allocation7]
        $region20: #{tpu_custom_call.1} parent=11 // pred_fallthru
          _
        // Predicated region
        $region21: #{tpu_custom_call.1} parent=11 // pred_check
          %p164 = pneg %p78
        $region22: #{tpu_custom_call.1} parent=11 // pred_check_branch
          %166 = sbr.rel (%p164) target = $region24
        $region23: #{tpu_custom_call.1} parent=11 // pred_region
          _
        $region24: #{tpu_custom_call.1} parent=11 // pred_fallthru
          _
        // Predicated region
        $region25: #{tpu_custom_call.1} parent=11 // pred_check
          %p167 = pneg %p99
        $region26: #{tpu_custom_call.1} parent=11 // pred_check_branch
          %169 = sbr.rel (%p167) target = $region28
        $region27: #{tpu_custom_call.1} parent=11 // pred_region
          _
        $region28: #{tpu_custom_call.1} parent=11 // pred_fallthru
          _
      $region12: #{tpu_custom_call.1} parent=5 // pred_fallthru
        _
      %p170 = scmp.lt.s32.totalorder %s15, 3
      // Predicated region
      $region29: #{tpu_custom_call.1} parent=5 // pred_check
        %p171 = pneg %p170
      $region30: #{tpu_custom_call.1} parent=5 // pred_check_branch
        %173 = sbr.rel (%p171) target = $region32
      $region31: #{tpu_custom_call.1} parent=5 // pred_region
        _
      $region32: #{tpu_custom_call.1} parent=5 // pred_fallthru
        _
      %p174 = scmp.le.s32.totalorder 1, %s15
      %p175 = scmp.lt.s32.totalorder %s15, 4
      %p176 = pnand %p174, %p175
      %p177 = pneg %p176
      // Predicated region
      $region33: #{tpu_custom_call.1} parent=5 // pred_check
        _
      $region34: #{tpu_custom_call.1} parent=5 // pred_check_branch
        %179 = sbr.rel (%p176) target = $region36
      $region35: #{tpu_custom_call.1} parent=5 // pred_region
        %s180 = ssub.s32 %s15, 1
        // Predicated region
        $region37: #{tpu_custom_call.1} parent=35 // pred_check
          %p181 = pneg %p36
        $region38: #{tpu_custom_call.1} parent=35 // pred_check_branch
          %183 = sbr.rel (%p181) target = $region40
        $region39: #{tpu_custom_call.1} parent=35 // pred_region
          %184 = dma.done [#allocation4], 256
        $region40: #{tpu_custom_call.1} parent=35 // pred_fallthru
          _
        // Predicated region
        $region41: #{tpu_custom_call.1} parent=35 // pred_check
          %p185 = pneg %p57
        $region42: #{tpu_custom_call.1} parent=35 // pred_check_branch
          %187 = sbr.rel (%p185) target = $region44
        $region43: #{tpu_custom_call.1} parent=35 // pred_region
          %188 = dma.done [#allocation7], 128
        $region44: #{tpu_custom_call.1} parent=35 // pred_fallthru
          _
        %p189 = pneg %p36
        %p190 = pneg %p33
        %p191 = pneg %p57
        %p192 = pneg %p54
        %p193 = pneg %p78
        %p194 = pneg %p75
        %p195 = pneg %p99
        %p196 = pneg %p96
        %p197 = pneg %p125
        %p198 = pneg %p122
        %s199 = sand.u32 %s112, 1
        %s200 = scalar_lea.sflag [#allocation5], %s199
        %s201 = sand.u32 %s112, 1
        %s202 = smul.addr %s201, 16
        %s203 = scalar_lea.vmem [#allocation8], %s202
        %p205 = scmp.eq.s32.totalorder %s20, 0
        // Predicated region
        $region45: #{tpu_custom_call.1} parent=35 // pred_check
          %p206 = pneg %p205
        $region46: #{tpu_custom_call.1} parent=35 // pred_check_branch
          %208 = sbr.rel (%p206) target = $region48
        $region47: #{tpu_custom_call.1} parent=35 // pred_region
          %v209 = vld [vmem:[#allocation3] sm:$0xff]
          %v210 = vld [vmem:[#allocation3 + $0x8] sm:$0xff]
          %211 = vst [vmem:[#allocation2] sm:$0xff] %v209
          %212 = vst [vmem:[#allocation2 + $0x8] sm:$0xff] %v210
        $region48: #{tpu_custom_call.1} parent=35 // pred_fallthru
          _
        %v213 = vld [vmem:[#allocation2] sm:$0xff]
        %v214 = vld [vmem:[#allocation2 + $0x8] sm:$0xff]
        %v217 = vcombine.high %v213, %v213
        %v218 = vcombine.high %v214, %v214
        %vm221 = vcmask 1043456
        %v222 = vsel %vm221, %v213, 0.0
        %v223 = vsel %vm221, %v217, 0.0
        %v224 = vadd.f32 %v222, %v223
        %225 = vadd.xlane.f32.xlu0 %v224
        %v226 = vpop.xlane.xlu0 %225
        %v227 = vsel %vm221, %v214, 0.0
        %v228 = vsel %vm221, %v218, 0.0
        %v229 = vadd.f32 %v227, %v228
        %230 = vadd.xlane.f32.xlu0 %v229
        %v231 = vpop.xlane.xlu0 %230
        %v232 = vmul.f32 %v226, 0.00390625
        %v233 = vmul.f32 %v231, 0.00390625
        %v237 = vunpack.c.l.s4 839922192
        %v238 = vunpack.c.0.s8 %v237
        %v239 = vlaneseq
        %v240 = vshrl.u32 %v239, 7
        %v241 = vsub.s32 %v238, %v240
        %v242 = vrot.slane %v232, %v241
        %v244 = vunpack.c.l.s4 839922192
        %v245 = vunpack.c.0.s8 %v244
        %v246 = vlaneseq
        %v247 = vshrl.u32 %v246, 7
        %v248 = vsub.s32 %v245, %v247
        %v249 = vrot.slane %v233, %v248
        %v252 = vsub.f32 %v213, %v242
        %v253 = vsub.f32 %v214, %v249
        %v254 = vmul.f32 %v252, %v252
        %v255 = vmul.f32 %v253, %v253
        %v258 = vcombine.high %v254, %v254
        %v259 = vcombine.high %v255, %v255
        %v262 = vsel %vm221, %v254, 0.0
        %v263 = vsel %vm221, %v258, 0.0
        %v264 = vadd.f32 %v262, %v263
        %265 = vadd.xlane.f32.xlu0 %v264
        %v266 = vpop.xlane.xlu0 %265
        %v267 = vsel %vm221, %v255, 0.0
        %v268 = vsel %vm221, %v259, 0.0
        %v269 = vadd.f32 %v267, %v268
        %270 = vadd.xlane.f32.xlu0 %v269
        %v271 = vpop.xlane.xlu0 %270
        %v272 = vmul.f32 %v266, 0.00390625
        %v273 = vmul.f32 %v271, 0.00390625
        %v274 = vadd.f32 %v272, 1e-06
        %v275 = vadd.f32 %v273, 1e-06
        %v276 = vrsqrt.pop %v274
        %v277 = vrsqrt.pop %v275
        %v278 = vmul.f32 %v274, %v276
        %v279 = vmul.f32 %v275, %v277
        %v283 = vunpack.c.l.s4 839922192
        %v284 = vunpack.c.0.s8 %v283
        %v285 = vlaneseq
        %v286 = vshrl.u32 %v285, 7
        %v287 = vsub.s32 %v284, %v286
        %v288 = vrot.slane %v276, %v287
        %v290 = vunpack.c.l.s4 839922192
        %v291 = vunpack.c.0.s8 %v290
        %v292 = vlaneseq
        %v293 = vshrl.u32 %v292, 7
        %v294 = vsub.s32 %v291, %v293
        %v295 = vrot.slane %v277, %v294
        %v298 = vmul.f32 %v252, %v288
        %v299 = vmul.f32 %v253, %v295
        %v302 = vcombine.high %v298, %v298
        %v303 = vcombine.high %v299, %v299
        %v306 = vpack.c.bf16 %v298, %v298
        %v307 = vpack.c.bf16 %v302, %v302
        %v308 = vpack.c.bf16 %v299, %v299
        %v309 = vpack.c.bf16 %v303, %v303
        %v310 = vld [vmem:[%s2] sm:$0x3]
        %vm311 = vcmask 31744
        %v313 = vsel %vm311, %v310, 0
        %vm315 = vcmask 1041408
        %v317 = vsel %vm315, %v306, 0
        %v320 = vsel %vm315, %v307, 0
        %322 = vmatprep.subr.bf16.mxu0 0
        %323 = vmatpush1.bf16.msra.mxu0 0
        %324 = vmatprep.subr.bf16.mxu0 0
        %325 = vmatpush1.bf16.msra.mxu0 0
        %326 = vmatprep.subr.bf16.mxu0 0
        %327 = vmatpush1.bf16.msra.mxu0 0
        %328 = vmatprep.subr.bf16.mxu0 0
        %329 = vmatpush1.bf16.msra.mxu0 0
        %330 = vmatprep.subr.bf16.mxu0 0
        %331 = vmatpush1.bf16.msra.mxu0 0
        %332 = vmatprep.subr.bf16.mxu0 0
        %333 = vmatpush1.bf16.msra.mxu0 0
        %334 = vmatprep.subr.bf16.mxu0 0
        %335 = vmatpush1.bf16.msra.mxu0 0
        %336 = vmatprep.subr.bf16.mxu0 %v320
        %337 = vmatpush1.bf16.msra.mxu0 %v317
        %338 = vmatprep.subr.bf16.mxu0 0
        %339 = vmatpush2.bf16.msra.mxu0 0
        %340 = vmatprep.subr.bf16.mxu0 0
        %341 = vmatpush2.bf16.msra.mxu0 0
        %342 = vmatprep.subr.bf16.mxu0 0
        %343 = vmatpush2.bf16.msra.mxu0 0
        %344 = vmatprep.subr.bf16.mxu0 0
        %345 = vmatpush2.bf16.msra.mxu0 0
        %346 = vmatprep.subr.bf16.mxu0 0
        %347 = vmatpush2.bf16.msra.mxu0 0
        %348 = vmatprep.subr.bf16.mxu0 0
        %349 = vmatpush2.bf16.msra.mxu0 0
        %350 = vmatprep.subr.bf16.mxu0 0
        %351 = vmatpush2.bf16.msra.mxu0 0
        %352 = vmatprep.subr.bf16.mxu0 0
        %353 = vmatpush2.bf16.msra.mxu0 0
        %354 = vmatprep.mubr.bf16.mxu0 0
        %355 = vmatmul.mubr.bf16.gmra.mxu0 %v313
        %v356 = vpop.f32.mrf.mxu0
        %v357 = vadd.f32 0.0, %v356
        %v358 = vpop.f32.mrf.mxu0
        %v359 = vadd.f32 0.0, %v358
        %v360 = vpop.f32.mrf.mxu0
        %v361 = vpop.f32.mrf.mxu0
        %362 = vdwg.mxu0
        %v364 = vsel %vm315, %v308, 0
        %v367 = vsel %vm315, %v309, 0
        %369 = vmatprep.subr.bf16.mxu0 0
        %370 = vmatpush1.bf16.msra.mxu0 0
        %371 = vmatprep.subr.bf16.mxu0 0
        %372 = vmatpush1.bf16.msra.mxu0 0
        %373 = vmatprep.subr.bf16.mxu0 0
        %374 = vmatpush1.bf16.msra.mxu0 0
        %375 = vmatprep.subr.bf16.mxu0 0
        %376 = vmatpush1.bf16.msra.mxu0 0
        %377 = vmatprep.subr.bf16.mxu0 0
        %378 = vmatpush1.bf16.msra.mxu0 0
        %379 = vmatprep.subr.bf16.mxu0 0
        %380 = vmatpush1.bf16.msra.mxu0 0
        %381 = vmatprep.subr.bf16.mxu0 0
        %382 = vmatpush1.bf16.msra.mxu0 0
        %383 = vmatprep.subr.bf16.mxu0 %v367
        %384 = vmatpush1.bf16.msra.mxu0 %v364
        %385 = vmatprep.subr.bf16.mxu0 0
        %386 = vmatpush2.bf16.msra.mxu0 0
        %387 = vmatprep.subr.bf16.mxu0 0
        %388 = vmatpush2.bf16.msra.mxu0 0
        %389 = vmatprep.subr.bf16.mxu0 0
        %390 = vmatpush2.bf16.msra.mxu0 0
        %391 = vmatprep.subr.bf16.mxu0 0
        %392 = vmatpush2.bf16.msra.mxu0 0
        %393 = vmatprep.subr.bf16.mxu0 0
        %394 = vmatpush2.bf16.msra.mxu0 0
        %395 = vmatprep.subr.bf16.mxu0 0
        %396 = vmatpush2.bf16.msra.mxu0 0
        %397 = vmatprep.subr.bf16.mxu0 0
        %398 = vmatpush2.bf16.msra.mxu0 0
        %399 = vmatprep.subr.bf16.mxu0 0
        %400 = vmatpush2.bf16.msra.mxu0 0
        %401 = vmatprep.mubr.bf16.mxu0 0
        %402 = vmatmul.mubr.bf16.gmra.mxu0 %v313
        %v403 = vpop.f32.mrf.mxu0
        %v404 = vadd.f32 0.0, %v403
        %v405 = vpop.f32.mrf.mxu0
        %v406 = vadd.f32 0.0, %v405
        %v407 = vpop.f32.mrf.mxu0
        %v408 = vpop.f32.mrf.mxu0
        %409 = vdwg.mxu0
        %v410 = vld [vmem:[#allocation6] sm:$0xff]
        %v412 = vcombine.high %v410, %v410
        %v414 = vadd.f32 %v357, %v410
        %v415 = vadd.f32 %v359, %v412
        %v416 = vadd.f32 %v404, %v410
        %v417 = vadd.f32 %v406, %v412
        %v418 = vld [vmem:[%s3] sm:$0xf]
        %420 = vset.pattern.permute.xlu0 0
        %421 = vperm.xlu0 %420, %v418
        %v422 = vpop.permute.xlu0 %421
        %v424 = vadd.f32 %v414, %v422
        %v425 = vadd.f32 %v415, %v422
        %v426 = vadd.f32 %v416, %v422
        %v427 = vadd.f32 %v417, %v422
        %v428 = vmul.f32 %v278, %v424
        %v429 = vmul.f32 %v278, %v425
        %v430 = vmul.f32 %v279, %v426
        %v431 = vmul.f32 %v279, %v427
        %v432 = vadd.f32 %v428, %v232
        %v433 = vadd.f32 %v429, %v232
        %v434 = vadd.f32 %v430, %v233
        %v435 = vadd.f32 %v431, %v233
        %v436 = vadd.f32 %v432, %v213
        %v437 = vadd.f32 %v433, %v217
        %v438 = vadd.f32 %v434, %v214
        %v439 = vadd.f32 %v435, %v218
        %v444 = vcombine.low %v436, %v437
        %v445 = vcombine.low %v438, %v439
        %448 = vst [vmem:[%s203] sm:$0xff] %v444
        %449 = vst [vmem:[%s203 + $0x8] sm:$0xff] %v445
        %p450 = scmp.ne.s32.totalorder %s20, 2
        // Predicated region
        $region49: #{tpu_custom_call.1} parent=35 // pred_check
          %p451 = pneg %p450
        $region50: #{tpu_custom_call.1} parent=35 // pred_check_branch
          %453 = sbr.rel (%p451) target = $region52
        $region51: #{tpu_custom_call.1} parent=35 // pred_region
          %454 = vst [vmem:[#allocation2] sm:$0xff] %v444
          %455 = vst [vmem:[#allocation2 + $0x8] sm:$0xff] %v445
        $region52: #{tpu_custom_call.1} parent=35 // pred_fallthru
          _
        %s456 = sand.u32 %s112, 1
        %s457 = scalar_lea.sflag [#allocation5], %s456
        %s458 = sand.u32 %s112, 1
        %s459 = smul.addr %s458, 16
        %s460 = scalar_lea.vmem [#allocation8], %s459
        // Predicated region
        $region53: #{tpu_custom_call.1} parent=35 // pred_check
          %p461 = pneg %p122
        $region54: #{tpu_custom_call.1} parent=35 // pred_check_branch
          %463 = sbr.rel (%p461) target = $region56
        $region55: #{tpu_custom_call.1} parent=35 // pred_region
          %s465 = ssub.s32 256, 256
          %466 = vsyncadd %s457, %s465
          %s467 = smul.addr %s20, 2
          %s468 = smul.addr %s467, 64
          %s469 = scalar_lea.hbm %s4, %s468
          %s470 = sshll.u32 %s460, 4
          %s471 = int_to_ptr.vmem [resolvable:$true] %s470
          %476 = dma.vmem_to_hbm [thread:$0]  %s471, 256, %s469, %s457, 128, 384, 8
        $region56: #{tpu_custom_call.1} parent=35 // pred_fallthru
          _
      $region36: #{tpu_custom_call.1} parent=5 // pred_fallthru
        _
      %p477 = scmp.le.s32.totalorder 2, %s15
      // Predicated region
      $region57: #{tpu_custom_call.1} parent=5 // pred_check
        %p478 = pneg %p477
      $region58: #{tpu_custom_call.1} parent=5 // pred_check_branch
        %480 = sbr.rel (%p478) target = $region60
      $region59: #{tpu_custom_call.1} parent=5 // pred_region
        %s481 = ssub.s32 %s15, 2
        // Predicated region
        $region61: #{tpu_custom_call.1} parent=59 // pred_check
          %p482 = pneg %p128
        $region62: #{tpu_custom_call.1} parent=59 // pred_check_branch
          %484 = sbr.rel (%p482) target = $region64
        $region63: #{tpu_custom_call.1} parent=59 // pred_region
          %s485 = sand.u32 %s113, 1
          %s486 = scalar_lea.sflag [#allocation5], %s485
          %s487 = sand.u32 %s113, 1
          %s488 = smul.addr %s487, 16
          %s489 = scalar_lea.vmem [#allocation8], %s488
          %490 = dma.done %s486, 256
        $region64: #{tpu_custom_call.1} parent=59 // pred_fallthru
          _
      $region60: #{tpu_custom_call.1} parent=5 // pred_fallthru
        _
    $region6: #{tpu_custom_call.1} parent=1 // loop_footer
      %s19 = sadd.s32 1, %s15
    $region7: #{tpu_custom_call.1} parent=1 // loop_footer_branch
      %14 = sbr.rel target = $region3
    $region8: #{tpu_custom_call.1} parent=1 // loop_exit
      _
    %491 = vsyncpa [#allocation4], 1
    %s492 = scalar_lea.sflag [#allocation4], 1
    %493 = vsyncpa %s492, 1
    %494 = vsyncpa [#allocation7], 1
    %495 = vsyncpa [#allocation5], 1
    %s496 = scalar_lea.sflag [#allocation5], 1
    %497 = vsyncpa %s496, 1

</llo_original>
